<compile_context>
chip_gen: v7x
topology: tpu7x:2x2x1
jax: 0.10.0
libtpu: 0.0.40
codegen_flags: <defaults>
</compile_context>

<pallas_src>
import jax
import jax.numpy as jnp
from jax.experimental import pallas as pl
from jax.experimental.pallas import tpu as pltpu


_NEG_SLOPE = 0.01  # F.leaky_relu default negative_slope


def _round_up(n, m):
    return ((n + m - 1) // m) * m


def _leaky_relu(x, slope=_NEG_SLOPE):
    return jnp.where(x >= 0, x, slope * x)


def basic_model_kernel(
    x_ref,
    w1_ref, b1_ref,
    w2_ref, b2_ref,
    w3_ref, b3_ref,
    w4_ref, b4_ref,
    o_ref,
):
    x = x_ref[...]                                                        # (TB, 12)

    h = jnp.dot(x, w1_ref[...], preferred_element_type=jnp.float32)      # (TB, 100)
    h = _leaky_relu(h + b1_ref[...])

    h = jnp.dot(h, w2_ref[...], preferred_element_type=jnp.float32)      # (TB, 100)
    h = _leaky_relu(h + b2_ref[...])

    h = jnp.dot(h, w3_ref[...], preferred_element_type=jnp.float32)      # (TB, 20)
    h = _leaky_relu(h + b3_ref[...])

    logits = jnp.dot(h, w4_ref[...], preferred_element_type=jnp.float32) # (TB, 5)
    logits = logits + b4_ref[...]

    # Five sigmoid heads concatenated along dim 1 (exp goes to the EUP slot).
    o_ref[...] = jax.nn.sigmoid(logits).astype(o_ref.dtype)


def basic_model_forward(x, params, *, block_b=2048):
    """x: (B, 12) float32 -> (B, 5) float32."""
    (w1, b1, w2, b2, w3, b3, w4, b4) = params
    B, f_in = x.shape

    # Batch tile: multiple of 8 sublanes, no larger than the padded batch.
    tb = max(8, min(_round_up(block_b, 8), _round_up(B, 8)))
    b_pad = _round_up(B, tb)
    if b_pad != B:
        x = jnp.pad(x, ((0, b_pad - B), (0, 0)))
    grid = (b_pad // tb,)

    batch_map = lambda i: (i, 0)
    const_map = lambda i: (0, 0)

    # Advisory cost estimate: 2*B*(12*100 + 100*100 + 100*20 + 20*5) flops,
    # 5 sigmoids per row, HBM bytes = x in + params in + out.
    flops = 2 * b_pad * (12 * 100 + 100 * 100 + 100 * 20 + 20 * 5)
    param_bytes = sum(int(p.size) * 4 for p in params)
    cost = pl.CostEstimate(
        flops=flops,
        transcendentals=5 * b_pad,
        bytes_accessed=b_pad * (f_in + 5) * 4 + param_bytes,
    )

    out = pl.pallas_call(
        basic_model_kernel,
        out_shape=jax.ShapeDtypeStruct((b_pad, 5), jnp.float32),
        grid=grid,
        in_specs=[
            pl.BlockSpec((tb, f_in), batch_map),          # x: tiled over batch
            pl.BlockSpec(w1.shape, const_map),            # weights/biases: resident
            pl.BlockSpec(b1.shape, const_map),
            pl.BlockSpec(w2.shape, const_map),
            pl.BlockSpec(b2.shape, const_map),
            pl.BlockSpec(w3.shape, const_map),
            pl.BlockSpec(b3.shape, const_map),
            pl.BlockSpec(w4.shape, const_map),
            pl.BlockSpec(b4.shape, const_map),
        ],
        out_specs=pl.BlockSpec((tb, 5), batch_map),
        compiler_params=pltpu.CompilerParams(
            dimension_semantics=("parallel",),            # v7x: 2 TCs share the batch axis
            vmem_limit_bytes=48 << 20,                    # headroom for large TB
        ),
        cost_estimate=cost,
    )(x, w1, b1, w2, b2, w3, b3, w4, b4)

    return out[:B]


def init_params(key):
    """Deterministic parameter init (uniform, like PyTorch Linear default).

    Weights stored (in_features, out_features) so the kernel computes x @ W + b.
    """
    def linear(key, fan_in, fan_out):
        k1, k2 = jax.random.split(key)
        bound = 1.0 / jnp.sqrt(float(fan_in))
        w = jax.random.uniform(k1, (fan_in, fan_out), jnp.float32, -bound, bound)
        b = jax.random.uniform(k2, (1, fan_out), jnp.float32, -bound, bound)
        return w, b

    keys = jax.random.split(key, 8)
    w1, b1 = linear(keys[0], 12, 100)
    w2, b2 = linear(keys[1], 100, 100)
    w3, b3 = linear(keys[2], 100, 20)
    # Five Linear(20, 1) heads fused into one (20, 5) projection.
    head_ws, head_bs = [], []
    for i in range(5):
        wi, bi = linear(keys[3 + i], 20, 1)
        head_ws.append(wi)
        head_bs.append(bi)
    w4 = jnp.concatenate(head_ws, axis=1)   # (20, 5)
    b4 = jnp.concatenate(head_bs, axis=1)   # (1, 5)
    return (w1, b1, w2, b2, w3, b3, w4, b4)


def reference_forward(x, params):
    (w1, b1, w2, b2, w3, b3, w4, b4) = params
    h = jax.nn.leaky_relu(x @ w1 + b1, _NEG_SLOPE)
    h = jax.nn.leaky_relu(h @ w2 + b2, _NEG_SLOPE)
    h = jax.nn.leaky_relu(h @ w3 + b3, _NEG_SLOPE)
    return jax.nn.sigmoid(h @ w4 + b4)


if __name__ == "__main__":
    key = jax.random.PRNGKey(0)
    k_param, k_x1, k_x2 = jax.random.split(key, 3)
    params = init_params(k_param)

    # Small single-tile case.
    B1 = 8
    x1 = jax.random.normal(k_x1, (B1, 12), dtype=jnp.float32)
    out1 = jax.block_until_ready(basic_model_forward(x1, params))
    ref1 = reference_forward(x1, params)
    assert out1.shape == (B1, 5), out1.shape
    assert jnp.allclose(out1, ref1, atol=1e-5, rtol=1e-5)

    # Multi-tile case with a ragged batch (exercises grid pipelining + padding).
    B2 = 200
    x2 = jax.random.normal(k_x2, (B2, 12), dtype=jnp.float32)
    out2 = jax.block_until_ready(basic_model_forward(x2, params, block_b=64))
    ref2 = reference_forward(x2, params)
    assert out2.shape == (B2, 5), out2.shape
    assert jnp.allclose(out2, ref2, atol=1e-5, rtol=1e-5)

    print("KERNEL_OK")
</pallas_src>

<mosaic_0001>
module attributes {stable_mosaic.version = 11 : i64} {
  func.func @basic_model_kernel(%arg0: i32, %arg1: memref<8x12xf32, #tpu.memory_space<vmem>>, %arg2: memref<12x100xf32, #tpu.memory_space<vmem>>, %arg3: memref<1x100xf32, #tpu.memory_space<vmem>>, %arg4: memref<100x100xf32, #tpu.memory_space<vmem>>, %arg5: memref<1x100xf32, #tpu.memory_space<vmem>>, %arg6: memref<100x20xf32, #tpu.memory_space<vmem>>, %arg7: memref<1x20xf32, #tpu.memory_space<vmem>>, %arg8: memref<20x5xf32, #tpu.memory_space<vmem>>, %arg9: memref<1x5xf32, #tpu.memory_space<vmem>>, %arg10: memref<8x5xf32, #tpu.memory_space<vmem>>) attributes {dimension_semantics = [#tpu.dimension_semantics<parallel>], iteration_bounds = array<i64: 1>, scalar_prefetch = 0 : i64, scratch_operands = 0 : i64, tpu.core_type = #tpu.core_type<tc>, window_params = [{transform_indices = @transform_0, window_bounds = array<i64: 8, 12>}, {pipeline_mode = #tpu.pipeline_mode<synchronous>, transform_indices = @transform_1, window_bounds = array<i64: 12, 100>}, {pipeline_mode = #tpu.pipeline_mode<synchronous>, transform_indices = @transform_2, window_bounds = array<i64: 1, 100>}, {pipeline_mode = #tpu.pipeline_mode<synchronous>, transform_indices = @transform_3, window_bounds = array<i64: 100, 100>}, {pipeline_mode = #tpu.pipeline_mode<synchronous>, transform_indices = @transform_4, window_bounds = array<i64: 1, 100>}, {pipeline_mode = #tpu.pipeline_mode<synchronous>, transform_indices = @transform_5, window_bounds = array<i64: 100, 20>}, {pipeline_mode = #tpu.pipeline_mode<synchronous>, transform_indices = @transform_6, window_bounds = array<i64: 1, 20>}, {pipeline_mode = #tpu.pipeline_mode<synchronous>, transform_indices = @transform_7, window_bounds = array<i64: 20, 5>}, {pipeline_mode = #tpu.pipeline_mode<synchronous>, transform_indices = @transform_8, window_bounds = array<i64: 1, 5>}, {transform_indices = @transform_9, window_bounds = array<i64: 8, 5>}]} {
    %c0 = arith.constant 0 : index
    %c0_0 = arith.constant 0 : index
    %0 = vector.load %arg1[%c0, %c0_0] : memref<8x12xf32, #tpu.memory_space<vmem>>, vector<8x12xf32>
    %c0_1 = arith.constant 0 : index
    %c0_2 = arith.constant 0 : index
    %1 = vector.load %arg2[%c0_1, %c0_2] : memref<12x100xf32, #tpu.memory_space<vmem>>, vector<12x100xf32>
    %cst = arith.constant dense<0.000000e+00> : vector<8x100xf32>
    %2 = tpu.matmul %0, %1, %cst {dimension_numbers = #tpu.dot_dimension_numbers<[1], [0], [0], [1], [0, 0, 1, 1], [], []>} : vector<8x12xf32>, vector<12x100xf32>, vector<8x100xf32> -> vector<8x100xf32>
    %c0_3 = arith.constant 0 : index
    %c0_4 = arith.constant 0 : index
    %3 = vector.load %arg3[%c0_3, %c0_4] : memref<1x100xf32, #tpu.memory_space<vmem>>, vector<1x100xf32>
    %4 = vector.broadcast %3 : vector<1x100xf32> to vector<8x100xf32>
    %5 = arith.addf %2, %4 : vector<8x100xf32>
    %cst_5 = arith.constant 0.000000e+00 : f32
    %6 = vector.broadcast %cst_5 : f32 to vector<8x100xf32>
    %7 = arith.cmpf oge, %5, %6 : vector<8x100xf32>
    %cst_6 = arith.constant 0.00999999977 : f32
    %8 = vector.broadcast %cst_6 : f32 to vector<8x100xf32>
    %9 = arith.mulf %8, %5 : vector<8x100xf32>
    %10 = arith.select %7, %5, %9 : vector<8x100xi1>, vector<8x100xf32>
    %c0_7 = arith.constant 0 : index
    %c0_8 = arith.constant 0 : index
    %11 = vector.load %arg4[%c0_7, %c0_8] : memref<100x100xf32, #tpu.memory_space<vmem>>, vector<100x100xf32>
    %cst_9 = arith.constant dense<0.000000e+00> : vector<8x100xf32>
    %12 = tpu.matmul %10, %11, %cst_9 {dimension_numbers = #tpu.dot_dimension_numbers<[1], [0], [0], [1], [0, 0, 1, 1], [], []>} : vector<8x100xf32>, vector<100x100xf32>, vector<8x100xf32> -> vector<8x100xf32>
    %c0_10 = arith.constant 0 : index
    %c0_11 = arith.constant 0 : index
    %13 = vector.load %arg5[%c0_10, %c0_11] : memref<1x100xf32, #tpu.memory_space<vmem>>, vector<1x100xf32>
    %14 = vector.broadcast %13 : vector<1x100xf32> to vector<8x100xf32>
    %15 = arith.addf %12, %14 : vector<8x100xf32>
    %cst_12 = arith.constant 0.000000e+00 : f32
    %16 = vector.broadcast %cst_12 : f32 to vector<8x100xf32>
    %17 = arith.cmpf oge, %15, %16 : vector<8x100xf32>
    %cst_13 = arith.constant 0.00999999977 : f32
    %18 = vector.broadcast %cst_13 : f32 to vector<8x100xf32>
    %19 = arith.mulf %18, %15 : vector<8x100xf32>
    %20 = arith.select %17, %15, %19 : vector<8x100xi1>, vector<8x100xf32>
    %c0_14 = arith.constant 0 : index
    %c0_15 = arith.constant 0 : index
    %21 = vector.load %arg6[%c0_14, %c0_15] : memref<100x20xf32, #tpu.memory_space<vmem>>, vector<100x20xf32>
    %cst_16 = arith.constant dense<0.000000e+00> : vector<8x20xf32>
    %22 = tpu.matmul %20, %21, %cst_16 {dimension_numbers = #tpu.dot_dimension_numbers<[1], [0], [0], [1], [0, 0, 1, 1], [], []>} : vector<8x100xf32>, vector<100x20xf32>, vector<8x20xf32> -> vector<8x20xf32>
    %c0_17 = arith.constant 0 : index
    %c0_18 = arith.constant 0 : index
    %23 = vector.load %arg7[%c0_17, %c0_18] : memref<1x20xf32, #tpu.memory_space<vmem>>, vector<1x20xf32>
    %24 = vector.broadcast %23 : vector<1x20xf32> to vector<8x20xf32>
    %25 = arith.addf %22, %24 : vector<8x20xf32>
    %cst_19 = arith.constant 0.000000e+00 : f32
    %26 = vector.broadcast %cst_19 : f32 to vector<8x20xf32>
    %27 = arith.cmpf oge, %25, %26 : vector<8x20xf32>
    %cst_20 = arith.constant 0.00999999977 : f32
    %28 = vector.broadcast %cst_20 : f32 to vector<8x20xf32>
    %29 = arith.mulf %28, %25 : vector<8x20xf32>
    %30 = arith.select %27, %25, %29 : vector<8x20xi1>, vector<8x20xf32>
    %c0_21 = arith.constant 0 : index
    %c0_22 = arith.constant 0 : index
    %31 = vector.load %arg8[%c0_21, %c0_22] : memref<20x5xf32, #tpu.memory_space<vmem>>, vector<20x5xf32>
    %cst_23 = arith.constant dense<0.000000e+00> : vector<8x5xf32>
    %32 = tpu.matmul %30, %31, %cst_23 {dimension_numbers = #tpu.dot_dimension_numbers<[1], [0], [0], [1], [0, 0, 1, 1], [], []>} : vector<8x20xf32>, vector<20x5xf32>, vector<8x5xf32> -> vector<8x5xf32>
    %c0_24 = arith.constant 0 : index
    %c0_25 = arith.constant 0 : index
    %33 = vector.load %arg9[%c0_24, %c0_25] : memref<1x5xf32, #tpu.memory_space<vmem>>, vector<1x5xf32>
    %34 = vector.broadcast %33 : vector<1x5xf32> to vector<8x5xf32>
    %35 = arith.addf %32, %34 : vector<8x5xf32>
    %36 = arith.negf %35 : vector<8x5xf32>
    %37 = math.exp %36 : vector<8x5xf32>
    %cst_26 = arith.constant 1.000000e+00 : f32
    %38 = vector.broadcast %cst_26 : f32 to vector<8x5xf32>
    %39 = arith.addf %38, %37 : vector<8x5xf32>
    %40 = arith.divf %38, %39 : vector<8x5xf32>
    %c0_27 = arith.constant 0 : index
    %c0_28 = arith.constant 0 : index
    %41 = vector.load %arg10[%c0_27, %c0_28] : memref<8x5xf32, #tpu.memory_space<vmem>>, vector<8x5xf32>
    tpu.vector_store %arg10[%c0_27, %c0_28], %40 {strides = array<i32>} : memref<8x5xf32, #tpu.memory_space<vmem>>, vector<8x5xf32>,
    return
  }
  func.func @transform_0(%arg0: i32) -> (i32, i32) {
    %c0_i32 = arith.constant 0 : i32
    %c0_i32_0 = arith.constant 0 : i32
    return %arg0, %c0_i32 : i32, i32
  }
  func.func @transform_1(%arg0: i32) -> (i32, i32) {
    %c0_i32 = arith.constant 0 : i32
    %c0_i32_0 = arith.constant 0 : i32
    %c0_i32_1 = arith.constant 0 : i32
    return %c0_i32, %c0_i32_0 : i32, i32
  }
  func.func @transform_2(%arg0: i32) -> (i32, i32) {
    %c0_i32 = arith.constant 0 : i32
    %c0_i32_0 = arith.constant 0 : i32
    %c0_i32_1 = arith.constant 0 : i32
    return %c0_i32, %c0_i32_0 : i32, i32
  }
  func.func @transform_3(%arg0: i32) -> (i32, i32) {
    %c0_i32 = arith.constant 0 : i32
    %c0_i32_0 = arith.constant 0 : i32
    %c0_i32_1 = arith.constant 0 : i32
    return %c0_i32, %c0_i32_0 : i32, i32
  }
  func.func @transform_4(%arg0: i32) -> (i32, i32) {
    %c0_i32 = arith.constant 0 : i32
    %c0_i32_0 = arith.constant 0 : i32
    %c0_i32_1 = arith.constant 0 : i32
    return %c0_i32, %c0_i32_0 : i32, i32
  }
  func.func @transform_5(%arg0: i32) -> (i32, i32) {
    %c0_i32 = arith.constant 0 : i32
    %c0_i32_0 = arith.constant 0 : i32
    %c0_i32_1 = arith.constant 0 : i32
    return %c0_i32, %c0_i32_0 : i32, i32
  }
  func.func @transform_6(%arg0: i32) -> (i32, i32) {
    %c0_i32 = arith.constant 0 : i32
    %c0_i32_0 = arith.constant 0 : i32
    %c0_i32_1 = arith.constant 0 : i32
    return %c0_i32, %c0_i32_0 : i32, i32
  }
  func.func @transform_7(%arg0: i32) -> (i32, i32) {
    %c0_i32 = arith.constant 0 : i32
    %c0_i32_0 = arith.constant 0 : i32
    %c0_i32_1 = arith.constant 0 : i32
    return %c0_i32, %c0_i32_0 : i32, i32
  }
  func.func @transform_8(%arg0: i32) -> (i32, i32) {
    %c0_i32 = arith.constant 0 : i32
    %c0_i32_0 = arith.constant 0 : i32
    %c0_i32_1 = arith.constant 0 : i32
    return %c0_i32, %c0_i32_0 : i32, i32
  }
  func.func @transform_9(%arg0: i32) -> (i32, i32) {
    %c0_i32 = arith.constant 0 : i32
    %c0_i32_0 = arith.constant 0 : i32
    return %arg0, %c0_i32 : i32, i32
  }
}

</mosaic_0001>

<llo_original>
// kernel: tpu_custom_call.1
$region0: #{tpu_custom_call.1}
  #allocation0 [shape = 'u32[]', space=smem, size = 0x4, offset = 0x4, fixed_abs, tag = 'smem constant byte address 0x4 - core index']
  #allocation1 [shape = 'u32[144,128]{1,0:T(1,128)}', space=vmem, size = 0x12000, scoped, tag = 'internal scratch']
  %s0 = inlined_call_operand.vmem [shape: f32[8,12], index: 0, kind: input, shape index: {}]
  %s1 = inlined_call_operand.vmem [shape: f32[12,100], index: 1, kind: input, shape index: {}]
  %s2 = inlined_call_operand.vmem [shape: f32[1,100], index: 2, kind: input, shape index: {}]
  %s3 = inlined_call_operand.vmem [shape: f32[100,100], index: 3, kind: input, shape index: {}]
  %s4 = inlined_call_operand.vmem [shape: f32[1,100], index: 4, kind: input, shape index: {}]
  %s5 = inlined_call_operand.vmem [shape: f32[100,20], index: 5, kind: input, shape index: {}]
  %s6 = inlined_call_operand.vmem [shape: f32[1,20], index: 6, kind: input, shape index: {}]
  %s7 = inlined_call_operand.vmem [shape: f32[20,5], index: 7, kind: input, shape index: {}]
  %s8 = inlined_call_operand.vmem [shape: f32[1,5], index: 8, kind: input, shape index: {}]
  %s9 = inlined_call_operand.hbm [shape: f32[8,5], index: 9, kind: output, shape index: {}]
  %s10 = sld [smem:[#allocation0]]
  $region46: #{tpu_custom_call.1} parent=0
    _
  %s12 = ssub.s32 1, %s10
  %s13 = scalar_select 0, %s12, %s10
  $region1: #{tpu_custom_call.1} parent=0
    #allocation2 [shape = 'u8[4096]{0}', space=vmem, size = 0x1000, scoped, tag = 'output window, operand 0, single buffered']
    #allocation3 [shape = 's32[1]{0}', space=sflag, size = 0x4, scoped, tag = 'scoped memory for tpu_custom_call.1']
    %14 = vsyncpa [#allocation3], 0
    // Predicated region
    $region2: #{tpu_custom_call.1} parent=1 // pred_check
      _
    $region3: #{tpu_custom_call.1} parent=1 // pred_check_branch
      %16 = sbr.rel (0) target = $region5
    $region4: #{tpu_custom_call.1} parent=1 // pred_region
      _
    $region5: #{tpu_custom_call.1} parent=1 // pred_fallthru
      _
    // Predicated region
    $region6: #{tpu_custom_call.1} parent=1 // pred_check
      _
    $region7: #{tpu_custom_call.1} parent=1 // pred_check_branch
      %18 = sbr.rel (0) target = $region9
    $region8: #{tpu_custom_call.1} parent=1 // pred_region
      _
    $region9: #{tpu_custom_call.1} parent=1 // pred_fallthru
      _
    // Predicated region
    $region10: #{tpu_custom_call.1} parent=1 // pred_check
      _
    $region11: #{tpu_custom_call.1} parent=1 // pred_check_branch
      %20 = sbr.rel (0) target = $region13
    $region12: #{tpu_custom_call.1} parent=1 // pred_region
      _
    $region13: #{tpu_custom_call.1} parent=1 // pred_fallthru
      _
    // Predicated region
    $region14: #{tpu_custom_call.1} parent=1 // pred_check
      _
    $region15: #{tpu_custom_call.1} parent=1 // pred_check_branch
      %22 = sbr.rel (0) target = $region17
    $region16: #{tpu_custom_call.1} parent=1 // pred_region
      _
    $region17: #{tpu_custom_call.1} parent=1 // pred_fallthru
      _
    // Predicated region
    $region18: #{tpu_custom_call.1} parent=1 // pred_check
      _
    $region19: #{tpu_custom_call.1} parent=1 // pred_check_branch
      %24 = sbr.rel (0) target = $region21
    $region20: #{tpu_custom_call.1} parent=1 // pred_region
      _
    $region21: #{tpu_custom_call.1} parent=1 // pred_fallthru
      _
    // Predicated region
    $region22: #{tpu_custom_call.1} parent=1 // pred_check
      _
    $region23: #{tpu_custom_call.1} parent=1 // pred_check_branch
      %26 = sbr.rel (0) target = $region25
    $region24: #{tpu_custom_call.1} parent=1 // pred_region
      _
    $region25: #{tpu_custom_call.1} parent=1 // pred_fallthru
      _
    // Predicated region
    $region26: #{tpu_custom_call.1} parent=1 // pred_check
      _
    $region27: #{tpu_custom_call.1} parent=1 // pred_check_branch
      %28 = sbr.rel (0) target = $region29
    $region28: #{tpu_custom_call.1} parent=1 // pred_region
      _
    $region29: #{tpu_custom_call.1} parent=1 // pred_fallthru
      _
    // Predicated region
    $region30: #{tpu_custom_call.1} parent=1 // pred_check
      _
    $region31: #{tpu_custom_call.1} parent=1 // pred_check_branch
      %30 = sbr.rel (0) target = $region33
    $region32: #{tpu_custom_call.1} parent=1 // pred_region
      _
    $region33: #{tpu_custom_call.1} parent=1 // pred_fallthru
      _
    // Predicated region
    $region34: #{tpu_custom_call.1} parent=1 // pred_check
      _
    $region35: #{tpu_custom_call.1} parent=1 // pred_check_branch
      %32 = sbr.rel (0) target = $region37
    $region36: #{tpu_custom_call.1} parent=1 // pred_region
      _
    $region37: #{tpu_custom_call.1} parent=1 // pred_fallthru
      _
    %v33 = vld [vmem:[%s0] sm:$0xff]
    %v34 = vld [vmem:[%s1] sm:$0xff]
    %v35 = vld [vmem:[%s1 + $0x8] sm:$0xf]
    %v36 = vld [vmem:[%s2] sm:$0x1]
    %v38 = vlaneseq
    %v39 = vshrl.u32 %v38, 7
    %v40 = vsub.s32 0, %v39
    %v41 = vrot.slane %v36, %v40
    %vm43 = vcmask 97280
    %v45 = vsel %vm43, %v33, 0
    %vm47 = vcmask 1043456
    %v49 = vsel %vm47, %v35, 0
    %51 = vmatprep.subr.mxu0 0.0
    %52 = vmatpush1.msra.mxu0 %v34
    %53 = vmatprep.subr.mxu0 0.0
    %54 = vmatpush1.msra.mxu0 %v49
    %55 = vmatprep.subr.mxu0 0.0
    %56 = vmatpush1.msra.mxu0 0.0
    %57 = vmatprep.subr.mxu0 0.0
    %58 = vmatpush1.msra.mxu0 0.0
    %59 = vmatprep.subr.mxu0 0.0
    %60 = vmatpush1.msra.mxu0 0.0
    %61 = vmatprep.subr.mxu0 0.0
    %62 = vmatpush1.msra.mxu0 0.0
    %63 = vmatprep.subr.mxu0 0.0
    %64 = vmatpush1.msra.mxu0 0.0
    %65 = vmatprep.subr.mxu0 0.0
    %66 = vmatpush1.msra.mxu0 0.0
    %67 = vmatprep.subr.mxu0 0.0
    %68 = vmatpush1.msra.mxu0 0.0
    %69 = vmatprep.subr.mxu0 0.0
    %70 = vmatpush1.msra.mxu0 0.0
    %71 = vmatprep.subr.mxu0 0.0
    %72 = vmatpush1.msra.mxu0 0.0
    %73 = vmatprep.subr.mxu0 0.0
    %74 = vmatpush1.msra.mxu0 0.0
    %75 = vmatprep.subr.mxu0 0.0
    %76 = vmatpush1.msra.mxu0 0.0
    %77 = vmatprep.subr.mxu0 0.0
    %78 = vmatpush1.msra.mxu0 0.0
    %79 = vmatprep.subr.mxu0 0.0
    %80 = vmatpush1.msra.mxu0 0.0
    %81 = vmatprep.subr.mxu0 0.0
    %82 = vmatpush1.msra.mxu0 0.0
    %83 = vmatprep.subr.mxu0 0.0
    %84 = vmatpush1.msra.mxu0 0.0
    %85 = vmatprep.subr.mxu0 0.0
    %86 = vmatpush1.msra.mxu0 0.0
    %87 = vmatprep.subr.mxu0 0.0
    %88 = vmatpush1.msra.mxu0 0.0
    %89 = vmatprep.subr.mxu0 0.0
    %90 = vmatpush1.msra.mxu0 0.0
    %91 = vmatprep.subr.mxu0 0.0
    %92 = vmatpush1.msra.mxu0 0.0
    %93 = vmatprep.subr.mxu0 0.0
    %94 = vmatpush1.msra.mxu0 0.0
    %95 = vmatprep.subr.mxu0 0.0
    %96 = vmatpush1.msra.mxu0 0.0
    %97 = vmatprep.subr.mxu0 0.0
    %98 = vmatpush1.msra.mxu0 0.0
    %99 = vmatprep.subr.mxu0 0.0
    %100 = vmatpush1.msra.mxu0 0.0
    %101 = vmatprep.subr.mxu0 0.0
    %102 = vmatpush1.msra.mxu0 0.0
    %103 = vmatprep.subr.mxu0 0.0
    %104 = vmatpush1.msra.mxu0 0.0
    %105 = vmatprep.subr.mxu0 0.0
    %106 = vmatpush1.msra.mxu0 0.0
    %107 = vmatprep.subr.mxu0 0.0
    %108 = vmatpush1.msra.mxu0 0.0
    %109 = vmatprep.subr.mxu0 0.0
    %110 = vmatpush1.msra.mxu0 0.0
    %111 = vmatprep.subr.mxu0 0.0
    %112 = vmatpush1.msra.mxu0 0.0
    %113 = vmatprep.subr.mxu0 0.0
    %114 = vmatpush1.msra.mxu0 0.0
    %115 = vmatprep.mubr.f32.mxu0 0.0
    %116 = vmatmul.mubr.f32.gmra.mrb[0].mxu0 %v45
    %v117 = vpop.f32.mrb[0].mxu0
    %v118 = vadd.f32 %v41, %v117
    %v119 = vpop.f32.mrb[0].mxu0
    %120 = vdwg.mxu0
    %vm121 = vcmp.ge.f32.partialorder %v118, 0.0
    %v122 = vmul.f32 %v118, 0.01
    %v123 = vsel %vm121, %v118, %v122
    %v124 = vld [vmem:[%s3] sm:$0xff]
    %v125 = vld [vmem:[%s3 + $0x8] sm:$0xff]
    %v126 = vld [vmem:[%s3 + $0x10] sm:$0xff]
    %v127 = vld [vmem:[%s3 + $0x18] sm:$0xff]
    %v128 = vld [vmem:[%s3 + $0x20] sm:$0xff]
    %v129 = vld [vmem:[%s3 + $0x28] sm:$0xff]
    %v130 = vld [vmem:[%s3 + $0x30] sm:$0xff]
    %v131 = vld [vmem:[%s3 + $0x38] sm:$0xff]
    %v132 = vld [vmem:[%s3 + $0x40] sm:$0xff]
    %v133 = vld [vmem:[%s3 + $0x48] sm:$0xff]
    %v134 = vld [vmem:[%s3 + $0x50] sm:$0xff]
    %v135 = vld [vmem:[%s3 + $0x58] sm:$0xff]
    %v136 = vld [vmem:[%s3 + $0x60] sm:$0xf]
    %v137 = vld [vmem:[%s4] sm:$0x1]
    %v139 = vlaneseq
    %v140 = vshrl.u32 %v139, 7
    %v141 = vsub.s32 0, %v140
    %v142 = vrot.slane %v137, %v141
    %vm144 = vcmask 818176
    %v146 = vsel %vm144, %v123, 0
    %v149 = vsel %vm47, %v136, 0
    %151 = vmatprep.subr.mxu0 0.0
    %152 = vmatpush1.msra.mxu0 %v124
    %153 = vmatprep.subr.mxu0 0.0
    %154 = vmatpush1.msra.mxu0 %v125
    %155 = vmatprep.subr.mxu0 0.0
    %156 = vmatpush1.msra.mxu0 %v126
    %157 = vmatprep.subr.mxu0 0.0
    %158 = vmatpush1.msra.mxu0 %v127
    %159 = vmatprep.subr.mxu0 0.0
    %160 = vmatpush1.msra.mxu0 %v128
    %161 = vmatprep.subr.mxu0 0.0
    %162 = vmatpush1.msra.mxu0 %v129
    %163 = vmatprep.subr.mxu0 0.0
    %164 = vmatpush1.msra.mxu0 %v130
    %165 = vmatprep.subr.mxu0 0.0
    %166 = vmatpush1.msra.mxu0 %v131
    %167 = vmatprep.subr.mxu0 0.0
    %168 = vmatpush1.msra.mxu0 %v132
    %169 = vmatprep.subr.mxu0 0.0
    %170 = vmatpush1.msra.mxu0 %v133
    %171 = vmatprep.subr.mxu0 0.0
    %172 = vmatpush1.msra.mxu0 %v134
    %173 = vmatprep.subr.mxu0 0.0
    %174 = vmatpush1.msra.mxu0 %v135
    %175 = vmatprep.subr.mxu0 0.0
    %176 = vmatpush1.msra.mxu0 %v149
    %177 = vmatprep.subr.mxu0 0.0
    %178 = vmatpush1.msra.mxu0 0.0
    %179 = vmatprep.subr.mxu0 0.0
    %180 = vmatpush1.msra.mxu0 0.0
    %181 = vmatprep.subr.mxu0 0.0
    %182 = vmatpush1.msra.mxu0 0.0
    %183 = vmatprep.subr.mxu0 0.0
    %184 = vmatpush1.msra.mxu0 0.0
    %185 = vmatprep.subr.mxu0 0.0
    %186 = vmatpush1.msra.mxu0 0.0
    %187 = vmatprep.subr.mxu0 0.0
    %188 = vmatpush1.msra.mxu0 0.0
    %189 = vmatprep.subr.mxu0 0.0
    %190 = vmatpush1.msra.mxu0 0.0
    %191 = vmatprep.subr.mxu0 0.0
    %192 = vmatpush1.msra.mxu0 0.0
    %193 = vmatprep.subr.mxu0 0.0
    %194 = vmatpush1.msra.mxu0 0.0
    %195 = vmatprep.subr.mxu0 0.0
    %196 = vmatpush1.msra.mxu0 0.0
    %197 = vmatprep.subr.mxu0 0.0
    %198 = vmatpush1.msra.mxu0 0.0
    %199 = vmatprep.subr.mxu0 0.0
    %200 = vmatpush1.msra.mxu0 0.0
    %201 = vmatprep.subr.mxu0 0.0
    %202 = vmatpush1.msra.mxu0 0.0
    %203 = vmatprep.subr.mxu0 0.0
    %204 = vmatpush1.msra.mxu0 0.0
    %205 = vmatprep.subr.mxu0 0.0
    %206 = vmatpush1.msra.mxu0 0.0
    %207 = vmatprep.subr.mxu0 0.0
    %208 = vmatpush1.msra.mxu0 0.0
    %209 = vmatprep.subr.mxu0 0.0
    %210 = vmatpush1.msra.mxu0 0.0
    %211 = vmatprep.subr.mxu0 0.0
    %212 = vmatpush1.msra.mxu0 0.0
    %213 = vmatprep.subr.mxu0 0.0
    %214 = vmatpush1.msra.mxu0 0.0
    %215 = vmatprep.mubr.f32.mxu0 0.0
    %216 = vmatmul.mubr.f32.gmra.mrb[0].mxu0 %v146
    %v217 = vpop.f32.mrb[0].mxu0
    %v218 = vadd.f32 %v142, %v217
    %v219 = vpop.f32.mrb[0].mxu0
    %220 = vdwg.mxu0
    %vm221 = vcmp.ge.f32.partialorder %v218, 0.0
    %v222 = vmul.f32 %v218, 0.01
    %v223 = vsel %vm221, %v218, %v222
    %v224 = vld [vmem:[%s5] sm:$0xff]
    %v225 = vld [vmem:[%s5 + $0x8] sm:$0xff]
    %v226 = vld [vmem:[%s5 + $0x10] sm:$0xff]
    %v227 = vld [vmem:[%s5 + $0x18] sm:$0xff]
    %v228 = vld [vmem:[%s5 + $0x20] sm:$0xff]
    %v229 = vld [vmem:[%s5 + $0x28] sm:$0xff]
    %v230 = vld [vmem:[%s5 + $0x30] sm:$0xff]
    %v231 = vld [vmem:[%s5 + $0x38] sm:$0xff]
    %v232 = vld [vmem:[%s5 + $0x40] sm:$0xff]
    %v233 = vld [vmem:[%s5 + $0x48] sm:$0xff]
    %v234 = vld [vmem:[%s5 + $0x50] sm:$0xff]
    %v235 = vld [vmem:[%s5 + $0x58] sm:$0xff]
    %v236 = vld [vmem:[%s5 + $0x60] sm:$0xf]
    %v237 = vld [vmem:[%s6] sm:$0x1]
    %v239 = vlaneseq
    %v240 = vshrl.u32 %v239, 7
    %v241 = vsub.s32 0, %v240
    %v242 = vrot.slane %v237, %v241
    %v245 = vsel %vm144, %v223, 0
    %v248 = vsel %vm47, %v236, 0
    %250 = vmatprep.subr.mxu0 0.0
    %251 = vmatpush1.msra.mxu0 %v224
    %252 = vmatprep.subr.mxu0 0.0
    %253 = vmatpush1.msra.mxu0 %v225
    %254 = vmatprep.subr.mxu0 0.0
    %255 = vmatpush1.msra.mxu0 %v226
    %256 = vmatprep.subr.mxu0 0.0
    %257 = vmatpush1.msra.mxu0 %v227
    %258 = vmatprep.subr.mxu0 0.0
    %259 = vmatpush1.msra.mxu0 %v228
    %260 = vmatprep.subr.mxu0 0.0
    %261 = vmatpush1.msra.mxu0 %v229
    %262 = vmatprep.subr.mxu0 0.0
    %263 = vmatpush1.msra.mxu0 %v230
    %264 = vmatprep.subr.mxu0 0.0
    %265 = vmatpush1.msra.mxu0 %v231
    %266 = vmatprep.subr.mxu0 0.0
    %267 = vmatpush1.msra.mxu0 %v232
    %268 = vmatprep.subr.mxu0 0.0
    %269 = vmatpush1.msra.mxu0 %v233
    %270 = vmatprep.subr.mxu0 0.0
    %271 = vmatpush1.msra.mxu0 %v234
    %272 = vmatprep.subr.mxu0 0.0
    %273 = vmatpush1.msra.mxu0 %v235
    %274 = vmatprep.subr.mxu0 0.0
    %275 = vmatpush1.msra.mxu0 %v248
    %276 = vmatprep.subr.mxu0 0.0
    %277 = vmatpush1.msra.mxu0 0.0
    %278 = vmatprep.subr.mxu0 0.0
    %279 = vmatpush1.msra.mxu0 0.0
    %280 = vmatprep.subr.mxu0 0.0
    %281 = vmatpush1.msra.mxu0 0.0
    %282 = vmatprep.subr.mxu0 0.0
    %283 = vmatpush1.msra.mxu0 0.0
    %284 = vmatprep.subr.mxu0 0.0
    %285 = vmatpush1.msra.mxu0 0.0
    %286 = vmatprep.subr.mxu0 0.0
    %287 = vmatpush1.msra.mxu0 0.0
    %288 = vmatprep.subr.mxu0 0.0
    %289 = vmatpush1.msra.mxu0 0.0
    %290 = vmatprep.subr.mxu0 0.0
    %291 = vmatpush1.msra.mxu0 0.0
    %292 = vmatprep.subr.mxu0 0.0
    %293 = vmatpush1.msra.mxu0 0.0
    %294 = vmatprep.subr.mxu0 0.0
    %295 = vmatpush1.msra.mxu0 0.0
    %296 = vmatprep.subr.mxu0 0.0
    %297 = vmatpush1.msra.mxu0 0.0
    %298 = vmatprep.subr.mxu0 0.0
    %299 = vmatpush1.msra.mxu0 0.0
    %300 = vmatprep.subr.mxu0 0.0
    %301 = vmatpush1.msra.mxu0 0.0
    %302 = vmatprep.subr.mxu0 0.0
    %303 = vmatpush1.msra.mxu0 0.0
    %304 = vmatprep.subr.mxu0 0.0
    %305 = vmatpush1.msra.mxu0 0.0
    %306 = vmatprep.subr.mxu0 0.0
    %307 = vmatpush1.msra.mxu0 0.0
    %308 = vmatprep.subr.mxu0 0.0
    %309 = vmatpush1.msra.mxu0 0.0
    %310 = vmatprep.subr.mxu0 0.0
    %311 = vmatpush1.msra.mxu0 0.0
    %312 = vmatprep.subr.mxu0 0.0
    %313 = vmatpush1.msra.mxu0 0.0
    %314 = vmatprep.mubr.f32.mxu0 0.0
    %315 = vmatmul.mubr.f32.gmra.mrb[0].mxu0 %v245
    %v316 = vpop.f32.mrb[0].mxu0
    %v317 = vadd.f32 %v242, %v316
    %v318 = vpop.f32.mrb[0].mxu0
    %319 = vdwg.mxu0
    %vm320 = vcmp.ge.f32.partialorder %v317, 0.0
    %v321 = vmul.f32 %v317, 0.01
    %v322 = vsel %vm320, %v317, %v321
    %v323 = vld [vmem:[%s7] sm:$0xff]
    %v324 = vld [vmem:[%s7 + $0x8] sm:$0xff]
    %v325 = vld [vmem:[%s7 + $0x10] sm:$0xf]
    %v326 = vld [vmem:[%s8] sm:$0x1]
    %v328 = vlaneseq
    %v329 = vshrl.u32 %v328, 7
    %v330 = vsub.s32 0, %v329
    %v331 = vrot.slane %v326, %v330
    %vm333 = vcmask 162816
    %v335 = vsel %vm333, %v322, 0
    %v338 = vsel %vm47, %v325, 0
    %340 = vmatprep.subr.mxu0 0.0
    %341 = vmatpush1.msra.mxu0 %v323
    %342 = vmatprep.subr.mxu0 0.0
    %343 = vmatpush1.msra.mxu0 %v324
    %344 = vmatprep.subr.mxu0 0.0
    %345 = vmatpush1.msra.mxu0 %v338
    %346 = vmatprep.subr.mxu0 0.0
    %347 = vmatpush1.msra.mxu0 0.0
    %348 = vmatprep.subr.mxu0 0.0
    %349 = vmatpush1.msra.mxu0 0.0
    %350 = vmatprep.subr.mxu0 0.0
    %351 = vmatpush1.msra.mxu0 0.0
    %352 = vmatprep.subr.mxu0 0.0
    %353 = vmatpush1.msra.mxu0 0.0
    %354 = vmatprep.subr.mxu0 0.0
    %355 = vmatpush1.msra.mxu0 0.0
    %356 = vmatprep.subr.mxu0 0.0
    %357 = vmatpush1.msra.mxu0 0.0
    %358 = vmatprep.subr.mxu0 0.0
    %359 = vmatpush1.msra.mxu0 0.0
    %360 = vmatprep.subr.mxu0 0.0
    %361 = vmatpush1.msra.mxu0 0.0
    %362 = vmatprep.subr.mxu0 0.0
    %363 = vmatpush1.msra.mxu0 0.0
    %364 = vmatprep.subr.mxu0 0.0
    %365 = vmatpush1.msra.mxu0 0.0
    %366 = vmatprep.subr.mxu0 0.0
    %367 = vmatpush1.msra.mxu0 0.0
    %368 = vmatprep.subr.mxu0 0.0
    %369 = vmatpush1.msra.mxu0 0.0
    %370 = vmatprep.subr.mxu0 0.0
    %371 = vmatpush1.msra.mxu0 0.0
    %372 = vmatprep.subr.mxu0 0.0
    %373 = vmatpush1.msra.mxu0 0.0
    %374 = vmatprep.subr.mxu0 0.0
    %375 = vmatpush1.msra.mxu0 0.0
    %376 = vmatprep.subr.mxu0 0.0
    %377 = vmatpush1.msra.mxu0 0.0
    %378 = vmatprep.subr.mxu0 0.0
    %379 = vmatpush1.msra.mxu0 0.0
    %380 = vmatprep.subr.mxu0 0.0
    %381 = vmatpush1.msra.mxu0 0.0
    %382 = vmatprep.subr.mxu0 0.0
    %383 = vmatpush1.msra.mxu0 0.0
    %384 = vmatprep.subr.mxu0 0.0
    %385 = vmatpush1.msra.mxu0 0.0
    %386 = vmatprep.subr.mxu0 0.0
    %387 = vmatpush1.msra.mxu0 0.0
    %388 = vmatprep.subr.mxu0 0.0
    %389 = vmatpush1.msra.mxu0 0.0
    %390 = vmatprep.subr.mxu0 0.0
    %391 = vmatpush1.msra.mxu0 0.0
    %392 = vmatprep.subr.mxu0 0.0
    %393 = vmatpush1.msra.mxu0 0.0
    %394 = vmatprep.subr.mxu0 0.0
    %395 = vmatpush1.msra.mxu0 0.0
    %396 = vmatprep.subr.mxu0 0.0
    %397 = vmatpush1.msra.mxu0 0.0
    %398 = vmatprep.subr.mxu0 0.0
    %399 = vmatpush1.msra.mxu0 0.0
    %400 = vmatprep.subr.mxu0 0.0
    %401 = vmatpush1.msra.mxu0 0.0
    %402 = vmatprep.subr.mxu0 0.0
    %403 = vmatpush1.msra.mxu0 0.0
    %404 = vmatprep.mubr.f32.mxu0 0.0
    %405 = vmatmul.mubr.f32.gmra.mrb[0].mxu0 %v335
    %v406 = vpop.f32.mrb[0].mxu0
    %v407 = vadd.f32 %v331, %v406
    %v408 = vpop.f32.mrb[0].mxu0
    %409 = vdwg.mxu0
    %v410 = vxor.u32 %v407, 2147483648
    %v411 = vmul.f32 %v410, 1.442695
    %v412 = vpow.pop %v411
    %v413 = vadd.f32 %v412, 1.0
    %v414 = vrcp.pop %v413
    %v415 = vmul.f32 1.0, %v414
    %vm416 = vcmask 39936
    %417 = vst.msk [vmem:[#allocation2] sm:$0xff] %vm416, %v415
    // Predicated region
    $region38: #{tpu_custom_call.1} parent=1 // pred_check
      _
    $region39: #{tpu_custom_call.1} parent=1 // pred_check_branch
      %419 = sbr.rel (0) target = $region41
    $region40: #{tpu_custom_call.1} parent=1 // pred_region
      %s421 = ssub.s32 128, 128
      %422 = vsyncadd [#allocation3], %s421
      %s424 = sshll.u32 [#allocation2], 4
      %s425 = int_to_ptr.vmem [resolvable:$true] %s424
      %427 = dma.vmem_to_hbm [thread:$0]  %s425, 128, %s9, [#allocation3]
    $region41: #{tpu_custom_call.1} parent=1 // pred_fallthru
      _
    // Predicated region
    $region42: #{tpu_custom_call.1} parent=1 // pred_check
      _
    $region43: #{tpu_custom_call.1} parent=1 // pred_check_branch
      %429 = sbr.rel (0) target = $region45
    $region44: #{tpu_custom_call.1} parent=1 // pred_region
      %430 = dma.done [#allocation3], 128
    $region45: #{tpu_custom_call.1} parent=1 // pred_fallthru
      _
    %431 = vsyncpa [#allocation3], 1

</llo_original>
